<compile_context>
chip_gen: v6e
topology: v6e:2x2x1
jax: 0.10.0
libtpu: 0.0.40
codegen_flags: <defaults>
</compile_context>

<pallas_src>
import jax
import jax.numpy as jnp
from jax.experimental import pallas as pl
from jax.experimental.pallas import tpu as pltpu

_LANES = 128


def _logreg_kernel(params_ref, x_ref, o_ref):
    # params_ref: (3,) f32 in SMEM = [w0, w1, b]   (scalar-prefetch)
    # x_ref:      (2, TM, 128) f32 in VMEM         (feature-0 plane, feature-1 plane)
    # o_ref:      (TM, 128) f32 in VMEM            (lane-dense output slab)
    w0 = params_ref[0]
    w1 = params_ref[1]
    b = params_ref[2]
    logits = x_ref[0] * w0 + x_ref[1] * w1 + b      # VPU only; no MXU involvement
    o_ref[...] = jax.nn.sigmoid(logits)


def binary_classifier_forward(x, weight, bias, *, block_rows=1024):
    """x: (N, 2); weight: (1, 2) (PyTorch nn.Linear layout); bias: (1,). Returns (N, 1) f32."""
    n, f = x.shape
    assert f == 2 and weight.shape == (1, 2) and bias.shape == (1,)

    # [w0, w1, b] as a single SMEM scalar-prefetch array (no tiny VMEM param DMAs).
    params = jnp.concatenate(
        [weight.reshape(-1).astype(jnp.float32), bias.reshape(-1).astype(jnp.float32)]
    )  # (3,)

    # Lane-pack the input: (N, 2) -> (2, R, 128), padding N up to a whole number of blocks.
    rows = pl.cdiv(n, _LANES)                                  # packed rows of 128 samples
    tm = min(block_rows, max(8, ((rows + 7) // 8) * 8))        # block rows, multiple of 8
    r_pad = ((rows + tm - 1) // tm) * tm
    n_pad = r_pad * _LANES
    x_t = jnp.transpose(x.astype(jnp.float32))                 # (2, N) layout plumbing
    x_t = jnp.pad(x_t, ((0, 0), (0, n_pad - n)))
    x_packed = x_t.reshape(2, r_pad, _LANES)

    out = pl.pallas_call(
        _logreg_kernel,
        out_shape=jax.ShapeDtypeStruct((r_pad, _LANES), jnp.float32),
        grid_spec=pltpu.PrefetchScalarGridSpec(
            num_scalar_prefetch=1,
            grid=(r_pad // tm,),
            in_specs=[pl.BlockSpec((2, tm, _LANES), lambda i, p: (0, i, 0))],
            out_specs=pl.BlockSpec((tm, _LANES), lambda i, p: (i, 0)),
        ),
        compiler_params=pltpu.CompilerParams(
            dimension_semantics=("parallel",),
        ),
    )(params, x_packed)

    return out.reshape(-1)[:n].reshape(n, 1)


if __name__ == "__main__":
    key = jax.random.PRNGKey(0)
    kx, kw, kb = jax.random.split(key, 3)

    # Deterministic parameter init mimicking nn.Linear's U(-1/sqrt(fan_in), 1/sqrt(fan_in)).
    bound = 1.0 / jnp.sqrt(2.0)
    weight = jax.random.uniform(kw, (1, 2), minval=-bound, maxval=bound, dtype=jnp.float32)
    bias = jax.random.uniform(kb, (1,), minval=-bound, maxval=bound, dtype=jnp.float32)

    # Small toy batch matching nn.Linear(2, 1).
    x_small = jax.random.normal(kx, (8, 2), dtype=jnp.float32)
    out_small = jax.block_until_ready(binary_classifier_forward(x_small, weight, bias))
    ref_small = jax.nn.sigmoid(x_small @ weight.T + bias)
    assert out_small.shape == (8, 1)
    assert jnp.allclose(out_small, ref_small, atol=1e-5), (out_small, ref_small)

    # Larger batch with a tiny block size to exercise padding + a multi-step grid.
    x_big = jax.random.normal(kx, (2000, 2), dtype=jnp.float32)
    out_big = jax.block_until_ready(
        binary_classifier_forward(x_big, weight, bias, block_rows=8)
    )
    ref_big = jax.nn.sigmoid(x_big @ weight.T + bias)
    assert out_big.shape == (2000, 1)
    assert jnp.allclose(out_big, ref_big, atol=1e-5)

    print("KERNEL_OK")
</pallas_src>

<mosaic_0001>
module attributes {stable_mosaic.version = 11 : i64} {
  func.func @_logreg_kernel(%arg0: i32, %arg1: memref<3xf32, #tpu.memory_space<smem>>, %arg2: memref<2x8x128xf32, #tpu.memory_space<vmem>>, %arg3: memref<8x128xf32, #tpu.memory_space<vmem>>) attributes {dimension_semantics = [#tpu.dimension_semantics<parallel>], iteration_bounds = array<i64: 1>, scalar_prefetch = 1 : i64, scratch_operands = 0 : i64, tpu.core_type = #tpu.core_type<tc>, window_params = [{transform_indices = @transform_0, window_bounds = array<i64: 2, 8, 128>}, {transform_indices = @transform_1, window_bounds = array<i64: 8, 128>}]} {
    %c0 = arith.constant 0 : index
    %0 = memref.load %arg1[%c0] : memref<3xf32, #tpu.memory_space<smem>>
    %c1 = arith.constant 1 : index
    %1 = memref.load %arg1[%c1] : memref<3xf32, #tpu.memory_space<smem>>
    %c2 = arith.constant 2 : index
    %2 = memref.load %arg1[%c2] : memref<3xf32, #tpu.memory_space<smem>>
    %c0_0 = arith.constant 0 : index
    %c0_1 = arith.constant 0 : index
    %c0_2 = arith.constant 0 : index
    %3 = vector.load %arg2[%c0_0, %c0_1, %c0_2] : memref<2x8x128xf32, #tpu.memory_space<vmem>>, vector<1x8x128xf32>
    %4 = vector.shape_cast %3 : vector<1x8x128xf32> to vector<8x128xf32>
    %5 = vector.broadcast %0 : f32 to vector<8x128xf32>
    %6 = arith.mulf %4, %5 : vector<8x128xf32>
    %c1_3 = arith.constant 1 : index
    %c0_4 = arith.constant 0 : index
    %c0_5 = arith.constant 0 : index
    %7 = vector.load %arg2[%c1_3, %c0_4, %c0_5] : memref<2x8x128xf32, #tpu.memory_space<vmem>>, vector<1x8x128xf32>
    %8 = vector.shape_cast %7 : vector<1x8x128xf32> to vector<8x128xf32>
    %9 = vector.broadcast %1 : f32 to vector<8x128xf32>
    %10 = arith.mulf %8, %9 : vector<8x128xf32>
    %11 = arith.addf %6, %10 : vector<8x128xf32>
    %12 = vector.broadcast %2 : f32 to vector<8x128xf32>
    %13 = arith.addf %11, %12 : vector<8x128xf32>
    %14 = arith.negf %13 : vector<8x128xf32>
    %15 = math.exp %14 : vector<8x128xf32>
    %cst = arith.constant 1.000000e+00 : f32
    %16 = vector.broadcast %cst : f32 to vector<8x128xf32>
    %17 = arith.addf %16, %15 : vector<8x128xf32>
    %18 = arith.divf %16, %17 : vector<8x128xf32>
    %c0_6 = arith.constant 0 : index
    %c0_7 = arith.constant 0 : index
    %19 = vector.load %arg3[%c0_6, %c0_7] : memref<8x128xf32, #tpu.memory_space<vmem>>, vector<8x128xf32>
    tpu.vector_store %arg3[%c0_6, %c0_7], %18 {strides = array<i32>} : memref<8x128xf32, #tpu.memory_space<vmem>>, vector<8x128xf32>,
    return
  }
  func.func @transform_0(%arg0: i32, %arg1: memref<3xf32, #tpu.memory_space<smem>>) -> (i32, i32, i32) {
    %c0_i32 = arith.constant 0 : i32
    %c0_i32_0 = arith.constant 0 : i32
    %c0_i32_1 = arith.constant 0 : i32
    return %c0_i32, %arg0, %c0_i32_0 : i32, i32, i32
  }
  func.func @transform_1(%arg0: i32, %arg1: memref<3xf32, #tpu.memory_space<smem>>) -> (i32, i32) {
    %c0_i32 = arith.constant 0 : i32
    %c0_i32_0 = arith.constant 0 : i32
    return %arg0, %c0_i32 : i32, i32
  }
}

</mosaic_0001>

<llo_original>
// kernel: tpu_custom_call.1
$region0: #{tpu_custom_call.1}
  #allocation0 [shape = 'u32[]', space=smem, size = 0x4, offset = 0x4, fixed_abs, tag = 'smem constant byte address 0x4 - core index']
  #allocation1 [shape = 'u32[144,128]{1,0:T(1,128)}', space=vmem, size = 0x12000, scoped, tag = 'internal scratch']
  #allocation2 [shape = 's32[1]{0}', space=sflag, size = 0x4, scoped, tag = 'scoped memory for tpu_custom_call.1']
  #allocation3 [shape = 'u8[512]{0}', space=smem, size = 0x200, scoped, tag = 'prefetched SMEM operand 0']
  %s0 = inlined_call_operand.hbm [shape: f32[3], index: 0, kind: input, shape index: {}]
  %s1 = inlined_call_operand.hbm [shape: f32[2,8,128], index: 1, kind: input, shape index: {}]
  %s2 = inlined_call_operand.hbm [shape: f32[8,128], index: 2, kind: output, shape index: {}]
  %s3 = sld [smem:[#allocation0]]
  $region18: #{tpu_custom_call.1} parent=0
    _
  %s5 = ssub.s32 1, %s3
  %s6 = scalar_select 0, %s5, %s3
  %8 = dma.hbm_to_smem %s0, 16, [#allocation3], [#allocation2]
  %9 = dma.done [#allocation2], 16
  %10 = sfence
  $region1: #{tpu_custom_call.1} parent=0
    #allocation4 [shape = 'u8[8192]{0}', space=vmem, size = 0x2000, scoped, tag = 'input window, operand 1, single buffered']
    #allocation5 [shape = 's32[1]{0}', space=sflag, size = 0x4, scoped, tag = 'scoped memory for tpu_custom_call.1']
    #allocation6 [shape = 's32[1]{0}', space=sflag, size = 0x4, scoped, tag = 'scoped memory for tpu_custom_call.1']
    #allocation7 [shape = 'u8[4096]{0}', space=vmem, size = 0x1000, scoped, tag = 'output window, operand 0, single buffered']
    %11 = vsyncpa [#allocation5], 0
    %12 = vsyncpa [#allocation6], 0
    // Predicated region
    $region2: #{tpu_custom_call.1} parent=1 // pred_check
      _
    $region3: #{tpu_custom_call.1} parent=1 // pred_check_branch
      %14 = sbr.rel (0) target = $region5
    $region4: #{tpu_custom_call.1} parent=1 // pred_region
      %s16 = ssub.s32 256, 256
      %17 = vsyncadd [#allocation5], %s16
      %s18 = sshll.u32 [#allocation4], 4
      %s19 = int_to_ptr.vmem [resolvable:$true] %s18
      %24 = dma.hbm_to_vmem [thread:$0]  %s1, 256, %s19, [#allocation5], 128, 128, 8
    $region5: #{tpu_custom_call.1} parent=1 // pred_fallthru
      _
    // Predicated region
    $region6: #{tpu_custom_call.1} parent=1 // pred_check
      _
    $region7: #{tpu_custom_call.1} parent=1 // pred_check_branch
      %26 = sbr.rel (0) target = $region9
    $region8: #{tpu_custom_call.1} parent=1 // pred_region
      %27 = dma.done [#allocation5], 256
    $region9: #{tpu_custom_call.1} parent=1 // pred_fallthru
      _
    %s28 = sld [smem:[#allocation3]]
    %s29 = sld [smem:[#allocation3 + $0x1]]
    %s30 = sld [smem:[#allocation3 + $0x2]]
    %v31 = vld [vmem:[#allocation4] sm:$0xff]
    %v32 = vstv %s28
    %v33 = vmul.f32 %v31, %v32
    %s34 = scalar_lea.vmem [#allocation4], 8
    %v35 = vld [vmem:[%s34] sm:$0xff]
    %v36 = vstv %s29
    %v37 = vmul.f32 %v35, %v36
    %v38 = vadd.f32 %v33, %v37
    %v39 = vstv %s30
    %v40 = vadd.f32 %v38, %v39
    %v41 = vxor.u32 %v40, 2147483648
    %v42 = vmul.f32 %v41, 1.442695
    %v43 = vpow.pop %v42
    %v44 = vadd.f32 %v43, 1.0
    %v45 = vrcp.pop %v44
    %v46 = vmul.f32 1.0, %v45
    %47 = vst [vmem:[#allocation7] sm:$0xff] %v46
    // Predicated region
    $region10: #{tpu_custom_call.1} parent=1 // pred_check
      _
    $region11: #{tpu_custom_call.1} parent=1 // pred_check_branch
      %49 = sbr.rel (0) target = $region13
    $region12: #{tpu_custom_call.1} parent=1 // pred_region
      %s51 = ssub.s32 128, 128
      %52 = vsyncadd [#allocation6], %s51
      %s54 = sshll.u32 [#allocation7], 4
      %s55 = int_to_ptr.vmem [resolvable:$true] %s54
      %57 = dma.vmem_to_hbm [thread:$0]  %s55, 128, %s2, [#allocation6]
    $region13: #{tpu_custom_call.1} parent=1 // pred_fallthru
      _
    // Predicated region
    $region14: #{tpu_custom_call.1} parent=1 // pred_check
      _
    $region15: #{tpu_custom_call.1} parent=1 // pred_check_branch
      %59 = sbr.rel (0) target = $region17
    $region16: #{tpu_custom_call.1} parent=1 // pred_region
      %60 = dma.done [#allocation6], 128
    $region17: #{tpu_custom_call.1} parent=1 // pred_fallthru
      _
    %61 = vsyncpa [#allocation5], 1
    %62 = vsyncpa [#allocation6], 1

</llo_original>
